<compile_context>
chip_gen: v7x
topology: tpu7x:2x2x1
jax: 0.10.0
libtpu: 0.0.40
codegen_flags: <defaults>
</compile_context>

<pallas_src>
import functools

import jax
import jax.numpy as jnp
import numpy as np
from jax import lax
from jax.experimental import pallas as pl
from jax.experimental.pallas import tpu as pltpu

_INV_SQRT2 = 0.7071067811865476
_LN_EPS = 1e-5


def _round_up(n, m):
    return ((n + m - 1) // m) * m


def _gelu_exact(x):
    # PyTorch nn.GELU() default: exact erf-based GELU.
    return 0.5 * x * (1.0 + lax.erf(x * _INV_SQRT2))


def _const_spec(shape, single_buffer):
    """BlockSpec for a block whose index never changes across the grid."""
    nd = len(shape)
    imap = lambda *_: (0,) * nd
    if single_buffer and hasattr(pl, "Buffered"):
        try:
            return pl.BlockSpec(shape, imap, pipeline_mode=pl.Buffered(1))
        except (TypeError, ValueError):
            pass
    return pl.BlockSpec(shape, imap)


def _ffn_kernel(*refs, apply_dropout, e_true, matmul_dtype):
    if apply_dropout:
        (x_ref, g_ref, b_ref, w1_ref, b1_ref, w2_ref, b2_ref, m_ref, o_ref) = refs
    else:
        (x_ref, g_ref, b_ref, w1_ref, b1_ref, w2_ref, b2_ref, o_ref) = refs
        m_ref = None

    x = x_ref[...].astype(jnp.float32)            # (TM, Ep)
    e_pad = x.shape[-1]

    # ---- LayerNorm over the true embedding axis (padded cols masked out) ----
    if e_pad > e_true:
        col = lax.broadcasted_iota(jnp.int32, x.shape, 1)
        cmask = (col < e_true).astype(jnp.float32)
        x = x * cmask
        mean = jnp.sum(x, axis=-1, keepdims=True) * (1.0 / e_true)
        xc = (x - mean) * cmask
        var = jnp.sum(xc * xc, axis=-1, keepdims=True) * (1.0 / e_true)
    else:
        mean = jnp.mean(x, axis=-1, keepdims=True)
        xc = x - mean
        var = jnp.mean(xc * xc, axis=-1, keepdims=True)
    xn = xc * lax.rsqrt(var + _LN_EPS)
    # gamma/beta are zero-padded, so padded columns of xn stay exactly 0.
    xn = xn * g_ref[...] + b_ref[...]             # (TM, Ep)

    # ---- Linear(E -> H) + GELU on the MXU (low-precision inputs, f32 accumulate) ----
    h = jnp.dot(xn.astype(matmul_dtype), w1_ref[...],
                preferred_element_type=jnp.float32)
    h = _gelu_exact(h + b1_ref[...])              # (TM, Hp)

    # ---- Linear(H -> E) + GELU ----
    y = jnp.dot(h.astype(matmul_dtype), w2_ref[...],
                preferred_element_type=jnp.float32)
    y = _gelu_exact(y + b2_ref[...])              # (TM, Ep)

    # ---- optional training-time dropout: pre-scaled keep mask (0 or 1/(1-p)) ----
    if apply_dropout:
        y = y * m_ref[...]

    # ---- residual add with the *normalized* input (matches the PyTorch forward) ----
    o_ref[...] = (y + xn).astype(o_ref.dtype)


def feedback_net_forward(x, params, *, dropout=False, dropout_rate=0.1,
                         rng_key=None, tm=256, matmul_dtype=jnp.bfloat16):
    """x: (..., E) float32.  Returns same shape/dtype as x."""
    orig_shape = x.shape
    E = int(orig_shape[-1])
    H = int(params["w1"].shape[1])
    N = int(np.prod(orig_shape[:-1]))

    # Lane/MXU-aligned padded dims; row tile is a multiple of 8 (sublane).
    Ep = _round_up(E, 128)
    Hp = _round_up(H, 128)
    tm_eff = min(int(tm), _round_up(N, 8))
    Np = _round_up(N, tm_eff)

    f32 = jnp.float32
    xf = x.reshape(N, E).astype(f32)
    if Np != N or Ep != E:
        xf = jnp.pad(xf, ((0, Np - N), (0, Ep - E)))

    def pad2(a, r, c):
        return jnp.pad(a, ((0, r - a.shape[0]), (0, c - a.shape[1])))

    gamma = pad2(params["gamma"].reshape(1, E).astype(f32), 1, Ep)
    beta = pad2(params["beta"].reshape(1, E).astype(f32), 1, Ep)
    w1 = pad2(params["w1"].astype(f32), Ep, Hp).astype(matmul_dtype)
    b1 = pad2(params["b1"].reshape(1, H).astype(f32), 1, Hp)
    w2 = pad2(params["w2"].astype(f32), Hp, Ep).astype(matmul_dtype)
    b2 = pad2(params["b2"].reshape(1, E).astype(f32), 1, Ep)

    apply_dropout = bool(dropout) and float(dropout_rate) > 0.0
    inputs = [xf, gamma, beta, w1, b1, w2, b2]
    if apply_dropout:
        if rng_key is None:
            rng_key = jax.random.PRNGKey(0)
        keep = jax.random.bernoulli(rng_key, 1.0 - float(dropout_rate), (Np, Ep))
        inputs.append(keep.astype(f32) * (1.0 / (1.0 - float(dropout_rate))))

    kernel = functools.partial(_ffn_kernel, apply_dropout=apply_dropout,
                               e_true=E, matmul_dtype=matmul_dtype)

    # Advisory cost estimate for XLA's scheduler.
    wbytes = jnp.dtype(matmul_dtype).itemsize
    cost = None
    if hasattr(pl, "CostEstimate"):
        cost = pl.CostEstimate(
            flops=4 * Np * Ep * Hp,
            transcendentals=Np * (Hp + Ep),
            bytes_accessed=(Np * Ep * 4 * (3 if apply_dropout else 2)
                            + 2 * Ep * Hp * wbytes + (3 * Ep + Hp) * 4))

    # VMEM budget: double-buffered activations (+mask) + resident weights + temps.
    needed = (4 * tm_eff * Ep * 4
              + (2 * tm_eff * Ep * 4 if apply_dropout else 0)
              + 2 * Ep * Hp * wbytes
              + tm_eff * (2 * Ep + Hp) * 4)
    vmem_limit = int(min(max(needed * 3 // 2, 32 * 1024 * 1024), 128 * 1024 * 1024))

    def _run(single_buffer):
        in_specs = [pl.BlockSpec((tm_eff, Ep), lambda i: (i, 0)),
                    _const_spec((1, Ep), single_buffer),
                    _const_spec((1, Ep), single_buffer),
                    _const_spec((Ep, Hp), single_buffer),
                    _const_spec((1, Hp), single_buffer),
                    _const_spec((Hp, Ep), single_buffer),
                    _const_spec((1, Ep), single_buffer)]
        if apply_dropout:
            in_specs.append(pl.BlockSpec((tm_eff, Ep), lambda i: (i, 0)))
        return pl.pallas_call(
            kernel,
            out_shape=jax.ShapeDtypeStruct((Np, Ep), x.dtype),
            grid=(Np // tm_eff,),
            in_specs=in_specs,
            out_specs=pl.BlockSpec((tm_eff, Ep), lambda i: (i, 0)),
            compiler_params=pltpu.CompilerParams(
                dimension_semantics=("parallel",),
                vmem_limit_bytes=vmem_limit),
            cost_estimate=cost,
        )(*inputs)

    try:
        out = _run(True)
    except Exception:
        # Fallback if this jax build rejects single-buffered (Buffered(1)) blocks.
        out = _run(False)

    return out[:N, :E].reshape(orig_shape)


def _reference(x, params):
    """Pure-JAX reference for the dropout=False path (f32)."""
    mean = jnp.mean(x, axis=-1, keepdims=True)
    var = jnp.mean((x - mean) ** 2, axis=-1, keepdims=True)
    xn = (x - mean) / jnp.sqrt(var + _LN_EPS)
    xn = xn * params["gamma"] + params["beta"]
    h = jax.nn.gelu(xn @ params["w1"] + params["b1"], approximate=False)
    y = jax.nn.gelu(h @ params["w2"] + params["b2"], approximate=False)
    return y + xn


def init_params(key, embedding_size, hidden):
    """PyTorch-style init (uniform +/- 1/sqrt(fan_in)); non-trivial LN affine for testing."""
    k1, k2, k3, k4, k5, k6 = jax.random.split(key, 6)
    lim1 = 1.0 / np.sqrt(embedding_size)
    lim2 = 1.0 / np.sqrt(hidden)
    return {
        "gamma": 1.0 + 0.1 * jax.random.normal(k5, (embedding_size,), jnp.float32),
        "beta": 0.1 * jax.random.normal(k6, (embedding_size,), jnp.float32),
        "w1": jax.random.uniform(k1, (embedding_size, hidden), jnp.float32, -lim1, lim1),
        "b1": jax.random.uniform(k2, (hidden,), jnp.float32, -lim1, lim1),
        "w2": jax.random.uniform(k3, (hidden, embedding_size), jnp.float32, -lim2, lim2),
        "b2": jax.random.uniform(k4, (embedding_size,), jnp.float32, -lim2, lim2),
    }


if __name__ == "__main__":
    key = jax.random.PRNGKey(0)
    B, S = 2, 8

    # Case 1: MXU/lane-aligned shapes, f32 matmul path -> tight check vs reference.
    E, H = 128, 256
    kx, kp, k2 = jax.random.split(key, 3)
    x = jax.random.normal(kx, (B, S, E), jnp.float32)
    params = init_params(kp, E, H)
    out = jax.block_until_ready(
        feedback_net_forward(x, params, dropout=False, matmul_dtype=jnp.float32))
    np.testing.assert_allclose(np.asarray(out), np.asarray(_reference(x, params)),
                               rtol=1e-5, atol=1e-5)

    # Case 2: unaligned E/H (exercises wrapper padding + masked LayerNorm), f32 -> tight.
    E2, H2 = 96, 160
    kx2, kp2 = jax.random.split(k2)
    x2 = jax.random.normal(kx2, (B, S, E2), jnp.float32)
    params2 = init_params(kp2, E2, H2)
    out2 = jax.block_until_ready(
        feedback_net_forward(x2, params2, dropout=False, matmul_dtype=jnp.float32))
    np.testing.assert_allclose(np.asarray(out2), np.asarray(_reference(x2, params2)),
                               rtol=1e-5, atol=1e-5)

    # Case 3: bf16 MXU-input path (default) -> loose check.
    out3 = jax.block_until_ready(
        feedback_net_forward(x, params, dropout=False, matmul_dtype=jnp.bfloat16))
    np.testing.assert_allclose(np.asarray(out3), np.asarray(_reference(x, params)),
                               rtol=5e-2, atol=5e-2)

    # Case 4: training path with dropout (deterministic host-side mask applied in-kernel).
    out_d = jax.block_until_ready(
        feedback_net_forward(x, params, dropout=True, dropout_rate=0.1,
                             rng_key=jax.random.PRNGKey(123)))
    assert out_d.shape == (B, S, E)
    assert np.all(np.isfinite(np.asarray(out_d)))
    assert not np.allclose(np.asarray(out_d), np.asarray(out))

    print("KERNEL_OK")
</pallas_src>

<mosaic_0001>
module attributes {stable_mosaic.version = 11 : i64} {
  func.func @_ffn_kernel(%arg0: i32, %arg1: memref<16x128xf32, #tpu.memory_space<vmem>>, %arg2: memref<1x128xf32, #tpu.memory_space<vmem>>, %arg3: memref<1x128xf32, #tpu.memory_space<vmem>>, %arg4: memref<128x256xf32, #tpu.memory_space<vmem>>, %arg5: memref<1x256xf32, #tpu.memory_space<vmem>>, %arg6: memref<256x128xf32, #tpu.memory_space<vmem>>, %arg7: memref<1x128xf32, #tpu.memory_space<vmem>>, %arg8: memref<16x128xf32, #tpu.memory_space<vmem>>) attributes {dimension_semantics = [#tpu.dimension_semantics<parallel>], iteration_bounds = array<i64: 1>, scalar_prefetch = 0 : i64, scratch_operands = 0 : i64, tpu.core_type = #tpu.core_type<tc>, window_params = [{transform_indices = @transform_0, window_bounds = array<i64: 16, 128>}, {pipeline_mode = #tpu.pipeline_mode<synchronous>, transform_indices = @transform_1, window_bounds = array<i64: 1, 128>}, {pipeline_mode = #tpu.pipeline_mode<synchronous>, transform_indices = @transform_2, window_bounds = array<i64: 1, 128>}, {pipeline_mode = #tpu.pipeline_mode<synchronous>, transform_indices = @transform_3, window_bounds = array<i64: 128, 256>}, {pipeline_mode = #tpu.pipeline_mode<synchronous>, transform_indices = @transform_4, window_bounds = array<i64: 1, 256>}, {pipeline_mode = #tpu.pipeline_mode<synchronous>, transform_indices = @transform_5, window_bounds = array<i64: 256, 128>}, {pipeline_mode = #tpu.pipeline_mode<synchronous>, transform_indices = @transform_6, window_bounds = array<i64: 1, 128>}, {transform_indices = @transform_7, window_bounds = array<i64: 16, 128>}]} {
    %c0 = arith.constant 0 : index
    %c0_0 = arith.constant 0 : index
    %0 = vector.load %arg1[%c0, %c0_0] : memref<16x128xf32, #tpu.memory_space<vmem>>, vector<16x128xf32>
    %cst = arith.constant dense<0.000000e+00> : vector<16xf32>
    %1 = vector.multi_reduction <add>, %0, %cst [1] : vector<16x128xf32> to vector<16xf32>
    %2 = vector.shape_cast %1 : vector<16xf32> to vector<16x1xf32>
    %cst_1 = arith.constant 1.280000e+02 : f32
    %3 = vector.broadcast %cst_1 : f32 to vector<16x1xf32>
    %4 = arith.divf %2, %3 : vector<16x1xf32>
    %5 = vector.broadcast %4 : vector<16x1xf32> to vector<16x128xf32>
    %6 = arith.subf %0, %5 : vector<16x128xf32>
    %7 = arith.mulf %6, %6 : vector<16x128xf32>
    %cst_2 = arith.constant dense<0.000000e+00> : vector<16xf32>
    %8 = vector.multi_reduction <add>, %7, %cst_2 [1] : vector<16x128xf32> to vector<16xf32>
    %9 = vector.shape_cast %8 : vector<16xf32> to vector<16x1xf32>
    %cst_3 = arith.constant 1.280000e+02 : f32
    %10 = vector.broadcast %cst_3 : f32 to vector<16x1xf32>
    %11 = arith.divf %9, %10 : vector<16x1xf32>
    %cst_4 = arith.constant 9.99999974E-6 : f32
    %12 = vector.broadcast %cst_4 : f32 to vector<16x1xf32>
    %13 = arith.addf %11, %12 : vector<16x1xf32>
    %14 = math.rsqrt %13 : vector<16x1xf32>
    %15 = vector.broadcast %14 : vector<16x1xf32> to vector<16x128xf32>
    %16 = arith.mulf %6, %15 : vector<16x128xf32>
    %c0_5 = arith.constant 0 : index
    %c0_6 = arith.constant 0 : index
    %17 = vector.load %arg2[%c0_5, %c0_6] : memref<1x128xf32, #tpu.memory_space<vmem>>, vector<1x128xf32>
    %18 = vector.broadcast %17 : vector<1x128xf32> to vector<16x128xf32>
    %19 = arith.mulf %16, %18 : vector<16x128xf32>
    %c0_7 = arith.constant 0 : index
    %c0_8 = arith.constant 0 : index
    %20 = vector.load %arg3[%c0_7, %c0_8] : memref<1x128xf32, #tpu.memory_space<vmem>>, vector<1x128xf32>
    %21 = vector.broadcast %20 : vector<1x128xf32> to vector<16x128xf32>
    %22 = arith.addf %19, %21 : vector<16x128xf32>
    %c0_9 = arith.constant 0 : index
    %c0_10 = arith.constant 0 : index
    %23 = vector.load %arg4[%c0_9, %c0_10] : memref<128x256xf32, #tpu.memory_space<vmem>>, vector<128x256xf32>
    %cst_11 = arith.constant dense<0.000000e+00> : vector<16x256xf32>
    %24 = tpu.matmul %22, %23, %cst_11 {dimension_numbers = #tpu.dot_dimension_numbers<[1], [0], [0], [1], [0, 0, 1, 1], [], []>} : vector<16x128xf32>, vector<128x256xf32>, vector<16x256xf32> -> vector<16x256xf32>
    %c0_12 = arith.constant 0 : index
    %c0_13 = arith.constant 0 : index
    %25 = vector.load %arg5[%c0_12, %c0_13] : memref<1x256xf32, #tpu.memory_space<vmem>>, vector<1x256xf32>
    %26 = vector.broadcast %25 : vector<1x256xf32> to vector<16x256xf32>
    %27 = arith.addf %24, %26 : vector<16x256xf32>
    %cst_14 = arith.constant 5.000000e-01 : f32
    %28 = vector.broadcast %cst_14 : f32 to vector<16x256xf32>
    %29 = arith.mulf %28, %27 : vector<16x256xf32>
    %cst_15 = arith.constant 0.707106769 : f32
    %30 = vector.broadcast %cst_15 : f32 to vector<16x256xf32>
    %31 = arith.mulf %27, %30 : vector<16x256xf32>
    %32 = math.erf %31 : vector<16x256xf32>
    %cst_16 = arith.constant 1.000000e+00 : f32
    %33 = vector.broadcast %cst_16 : f32 to vector<16x256xf32>
    %34 = arith.addf %33, %32 : vector<16x256xf32>
    %35 = arith.mulf %29, %34 : vector<16x256xf32>
    %c0_17 = arith.constant 0 : index
    %c0_18 = arith.constant 0 : index
    %36 = vector.load %arg6[%c0_17, %c0_18] : memref<256x128xf32, #tpu.memory_space<vmem>>, vector<256x128xf32>
    %cst_19 = arith.constant dense<0.000000e+00> : vector<16x128xf32>
    %37 = tpu.matmul %35, %36, %cst_19 {dimension_numbers = #tpu.dot_dimension_numbers<[1], [0], [0], [1], [0, 0, 1, 1], [], []>} : vector<16x256xf32>, vector<256x128xf32>, vector<16x128xf32> -> vector<16x128xf32>
    %c0_20 = arith.constant 0 : index
    %c0_21 = arith.constant 0 : index
    %38 = vector.load %arg7[%c0_20, %c0_21] : memref<1x128xf32, #tpu.memory_space<vmem>>, vector<1x128xf32>
    %39 = vector.broadcast %38 : vector<1x128xf32> to vector<16x128xf32>
    %40 = arith.addf %37, %39 : vector<16x128xf32>
    %cst_22 = arith.constant 5.000000e-01 : f32
    %41 = vector.broadcast %cst_22 : f32 to vector<16x128xf32>
    %42 = arith.mulf %41, %40 : vector<16x128xf32>
    %cst_23 = arith.constant 0.707106769 : f32
    %43 = vector.broadcast %cst_23 : f32 to vector<16x128xf32>
    %44 = arith.mulf %40, %43 : vector<16x128xf32>
    %45 = math.erf %44 : vector<16x128xf32>
    %cst_24 = arith.constant 1.000000e+00 : f32
    %46 = vector.broadcast %cst_24 : f32 to vector<16x128xf32>
    %47 = arith.addf %46, %45 : vector<16x128xf32>
    %48 = arith.mulf %42, %47 : vector<16x128xf32>
    %49 = arith.addf %48, %22 : vector<16x128xf32>
    %c0_25 = arith.constant 0 : index
    %c0_26 = arith.constant 0 : index
    %50 = vector.load %arg8[%c0_25, %c0_26] : memref<16x128xf32, #tpu.memory_space<vmem>>, vector<16x128xf32>
    tpu.vector_store %arg8[%c0_25, %c0_26], %49 {strides = array<i32>} : memref<16x128xf32, #tpu.memory_space<vmem>>, vector<16x128xf32>,
    return
  }
  func.func @transform_0(%arg0: i32) -> (i32, i32) {
    %c0_i32 = arith.constant 0 : i32
    %c0_i32_0 = arith.constant 0 : i32
    return %arg0, %c0_i32 : i32, i32
  }
  func.func @transform_1(%arg0: i32) -> (i32, i32) {
    %c0_i32 = arith.constant 0 : i32
    %c0_i32_0 = arith.constant 0 : i32
    %c0_i32_1 = arith.constant 0 : i32
    return %c0_i32, %c0_i32_0 : i32, i32
  }
  func.func @transform_2(%arg0: i32) -> (i32, i32) {
    %c0_i32 = arith.constant 0 : i32
    %c0_i32_0 = arith.constant 0 : i32
    %c0_i32_1 = arith.constant 0 : i32
    return %c0_i32, %c0_i32_0 : i32, i32
  }
  func.func @transform_3(%arg0: i32) -> (i32, i32) {
    %c0_i32 = arith.constant 0 : i32
    %c0_i32_0 = arith.constant 0 : i32
    %c0_i32_1 = arith.constant 0 : i32
    return %c0_i32, %c0_i32_0 : i32, i32
  }
  func.func @transform_4(%arg0: i32) -> (i32, i32) {
    %c0_i32 = arith.constant 0 : i32
    %c0_i32_0 = arith.constant 0 : i32
    %c0_i32_1 = arith.constant 0 : i32
    return %c0_i32, %c0_i32_0 : i32, i32
  }
  func.func @transform_5(%arg0: i32) -> (i32, i32) {
    %c0_i32 = arith.constant 0 : i32
    %c0_i32_0 = arith.constant 0 : i32
    %c0_i32_1 = arith.constant 0 : i32
    return %c0_i32, %c0_i32_0 : i32, i32
  }
  func.func @transform_6(%arg0: i32) -> (i32, i32) {
    %c0_i32 = arith.constant 0 : i32
    %c0_i32_0 = arith.constant 0 : i32
    %c0_i32_1 = arith.constant 0 : i32
    return %c0_i32, %c0_i32_0 : i32, i32
  }
  func.func @transform_7(%arg0: i32) -> (i32, i32) {
    %c0_i32 = arith.constant 0 : i32
    %c0_i32_0 = arith.constant 0 : i32
    return %arg0, %c0_i32 : i32, i32
  }
}

module attributes {stable_mosaic.version = 11 : i64} {
  func.func @_ffn_kernel(%arg0: i32, %arg1: memref<16x128xf32, #tpu.memory_space<vmem>>, %arg2: memref<1x128xf32, #tpu.memory_space<vmem>>, %arg3: memref<1x128xf32, #tpu.memory_space<vmem>>, %arg4: memref<128x256xf32, #tpu.memory_space<vmem>>, %arg5: memref<1x256xf32, #tpu.memory_space<vmem>>, %arg6: memref<256x128xf32, #tpu.memory_space<vmem>>, %arg7: memref<1x128xf32, #tpu.memory_space<vmem>>, %arg8: memref<16x128xf32, #tpu.memory_space<vmem>>) attributes {dimension_semantics = [#tpu.dimension_semantics<parallel>], iteration_bounds = array<i64: 1>, scalar_prefetch = 0 : i64, scratch_operands = 0 : i64, tpu.core_type = #tpu.core_type<tc>, window_params = [{transform_indices = @transform_0, window_bounds = array<i64: 16, 128>}, {pipeline_mode = #tpu.pipeline_mode<synchronous>, transform_indices = @transform_1, window_bounds = array<i64: 1, 128>}, {pipeline_mode = #tpu.pipeline_mode<synchronous>, transform_indices = @transform_2, window_bounds = array<i64: 1, 128>}, {pipeline_mode = #tpu.pipeline_mode<synchronous>, transform_indices = @transform_3, window_bounds = array<i64: 128, 256>}, {pipeline_mode = #tpu.pipeline_mode<synchronous>, transform_indices = @transform_4, window_bounds = array<i64: 1, 256>}, {pipeline_mode = #tpu.pipeline_mode<synchronous>, transform_indices = @transform_5, window_bounds = array<i64: 256, 128>}, {pipeline_mode = #tpu.pipeline_mode<synchronous>, transform_indices = @transform_6, window_bounds = array<i64: 1, 128>}, {transform_indices = @transform_7, window_bounds = array<i64: 16, 128>}]} {
    %c0 = arith.constant 0 : index
    %c0_0 = arith.constant 0 : index
    %0 = vector.load %arg1[%c0, %c0_0] : memref<16x128xf32, #tpu.memory_space<vmem>>, vector<16x128xf32>
    %cst = arith.constant dense<0.000000e+00> : vector<16xf32>
    %1 = vector.multi_reduction <add>, %0, %cst [1] : vector<16x128xf32> to vector<16xf32>
    %2 = vector.shape_cast %1 : vector<16xf32> to vector<16x1xf32>
    %cst_1 = arith.constant 1.280000e+02 : f32
    %3 = vector.broadcast %cst_1 : f32 to vector<16x1xf32>
    %4 = arith.divf %2, %3 : vector<16x1xf32>
    %5 = vector.broadcast %4 : vector<16x1xf32> to vector<16x128xf32>
    %6 = arith.subf %0, %5 : vector<16x128xf32>
    %7 = arith.mulf %6, %6 : vector<16x128xf32>
    %cst_2 = arith.constant dense<0.000000e+00> : vector<16xf32>
    %8 = vector.multi_reduction <add>, %7, %cst_2 [1] : vector<16x128xf32> to vector<16xf32>
    %9 = vector.shape_cast %8 : vector<16xf32> to vector<16x1xf32>
    %cst_3 = arith.constant 1.280000e+02 : f32
    %10 = vector.broadcast %cst_3 : f32 to vector<16x1xf32>
    %11 = arith.divf %9, %10 : vector<16x1xf32>
    %cst_4 = arith.constant 9.99999974E-6 : f32
    %12 = vector.broadcast %cst_4 : f32 to vector<16x1xf32>
    %13 = arith.addf %11, %12 : vector<16x1xf32>
    %14 = math.rsqrt %13 : vector<16x1xf32>
    %15 = vector.broadcast %14 : vector<16x1xf32> to vector<16x128xf32>
    %16 = arith.mulf %6, %15 : vector<16x128xf32>
    %c0_5 = arith.constant 0 : index
    %c0_6 = arith.constant 0 : index
    %17 = vector.load %arg2[%c0_5, %c0_6] : memref<1x128xf32, #tpu.memory_space<vmem>>, vector<1x128xf32>
    %18 = vector.broadcast %17 : vector<1x128xf32> to vector<16x128xf32>
    %19 = arith.mulf %16, %18 : vector<16x128xf32>
    %c0_7 = arith.constant 0 : index
    %c0_8 = arith.constant 0 : index
    %20 = vector.load %arg3[%c0_7, %c0_8] : memref<1x128xf32, #tpu.memory_space<vmem>>, vector<1x128xf32>
    %21 = vector.broadcast %20 : vector<1x128xf32> to vector<16x128xf32>
    %22 = arith.addf %19, %21 : vector<16x128xf32>
    %c0_9 = arith.constant 0 : index
    %c0_10 = arith.constant 0 : index
    %23 = vector.load %arg4[%c0_9, %c0_10] : memref<128x256xf32, #tpu.memory_space<vmem>>, vector<128x256xf32>
    %cst_11 = arith.constant dense<0.000000e+00> : vector<16x256xf32>
    %24 = tpu.matmul %22, %23, %cst_11 {dimension_numbers = #tpu.dot_dimension_numbers<[1], [0], [0], [1], [0, 0, 1, 1], [], []>} : vector<16x128xf32>, vector<128x256xf32>, vector<16x256xf32> -> vector<16x256xf32>
    %c0_12 = arith.constant 0 : index
    %c0_13 = arith.constant 0 : index
    %25 = vector.load %arg5[%c0_12, %c0_13] : memref<1x256xf32, #tpu.memory_space<vmem>>, vector<1x256xf32>
    %26 = vector.broadcast %25 : vector<1x256xf32> to vector<16x256xf32>
    %27 = arith.addf %24, %26 : vector<16x256xf32>
    %cst_14 = arith.constant 5.000000e-01 : f32
    %28 = vector.broadcast %cst_14 : f32 to vector<16x256xf32>
    %29 = arith.mulf %28, %27 : vector<16x256xf32>
    %cst_15 = arith.constant 0.707106769 : f32
    %30 = vector.broadcast %cst_15 : f32 to vector<16x256xf32>
    %31 = arith.mulf %27, %30 : vector<16x256xf32>
    %32 = math.erf %31 : vector<16x256xf32>
    %cst_16 = arith.constant 1.000000e+00 : f32
    %33 = vector.broadcast %cst_16 : f32 to vector<16x256xf32>
    %34 = arith.addf %33, %32 : vector<16x256xf32>
    %35 = arith.mulf %29, %34 : vector<16x256xf32>
    %c0_17 = arith.constant 0 : index
    %c0_18 = arith.constant 0 : index
    %36 = vector.load %arg6[%c0_17, %c0_18] : memref<256x128xf32, #tpu.memory_space<vmem>>, vector<256x128xf32>
    %cst_19 = arith.constant dense<0.000000e+00> : vector<16x128xf32>
    %37 = tpu.matmul %35, %36, %cst_19 {dimension_numbers = #tpu.dot_dimension_numbers<[1], [0], [0], [1], [0, 0, 1, 1], [], []>} : vector<16x256xf32>, vector<256x128xf32>, vector<16x128xf32> -> vector<16x128xf32>
    %c0_20 = arith.constant 0 : index
    %c0_21 = arith.constant 0 : index
    %38 = vector.load %arg7[%c0_20, %c0_21] : memref<1x128xf32, #tpu.memory_space<vmem>>, vector<1x128xf32>
    %39 = vector.broadcast %38 : vector<1x128xf32> to vector<16x128xf32>
    %40 = arith.addf %37, %39 : vector<16x128xf32>
    %cst_22 = arith.constant 5.000000e-01 : f32
    %41 = vector.broadcast %cst_22 : f32 to vector<16x128xf32>
    %42 = arith.mulf %41, %40 : vector<16x128xf32>
    %cst_23 = arith.constant 0.707106769 : f32
    %43 = vector.broadcast %cst_23 : f32 to vector<16x128xf32>
    %44 = arith.mulf %40, %43 : vector<16x128xf32>
    %45 = math.erf %44 : vector<16x128xf32>
    %cst_24 = arith.constant 1.000000e+00 : f32
    %46 = vector.broadcast %cst_24 : f32 to vector<16x128xf32>
    %47 = arith.addf %46, %45 : vector<16x128xf32>
    %48 = arith.mulf %42, %47 : vector<16x128xf32>
    %49 = arith.addf %48, %22 : vector<16x128xf32>
    %c0_25 = arith.constant 0 : index
    %c0_26 = arith.constant 0 : index
    %50 = vector.load %arg8[%c0_25, %c0_26] : memref<16x128xf32, #tpu.memory_space<vmem>>, vector<16x128xf32>
    tpu.vector_store %arg8[%c0_25, %c0_26], %49 {strides = array<i32>} : memref<16x128xf32, #tpu.memory_space<vmem>>, vector<16x128xf32>,
    return
  }
  func.func @transform_0(%arg0: i32) -> (i32, i32) {
    %c0_i32 = arith.constant 0 : i32
    %c0_i32_0 = arith.constant 0 : i32
    return %arg0, %c0_i32 : i32, i32
  }
  func.func @transform_1(%arg0: i32) -> (i32, i32) {
    %c0_i32 = arith.constant 0 : i32
    %c0_i32_0 = arith.constant 0 : i32
    %c0_i32_1 = arith.constant 0 : i32
    return %c0_i32, %c0_i32_0 : i32, i32
  }
  func.func @transform_2(%arg0: i32) -> (i32, i32) {
    %c0_i32 = arith.constant 0 : i32
    %c0_i32_0 = arith.constant 0 : i32
    %c0_i32_1 = arith.constant 0 : i32
    return %c0_i32, %c0_i32_0 : i32, i32
  }
  func.func @transform_3(%arg0: i32) -> (i32, i32) {
    %c0_i32 = arith.constant 0 : i32
    %c0_i32_0 = arith.constant 0 : i32
    %c0_i32_1 = arith.constant 0 : i32
    return %c0_i32, %c0_i32_0 : i32, i32
  }
  func.func @transform_4(%arg0: i32) -> (i32, i32) {
    %c0_i32 = arith.constant 0 : i32
    %c0_i32_0 = arith.constant 0 : i32
    %c0_i32_1 = arith.constant 0 : i32
    return %c0_i32, %c0_i32_0 : i32, i32
  }
  func.func @transform_5(%arg0: i32) -> (i32, i32) {
    %c0_i32 = arith.constant 0 : i32
    %c0_i32_0 = arith.constant 0 : i32
    %c0_i32_1 = arith.constant 0 : i32
    return %c0_i32, %c0_i32_0 : i32, i32
  }
  func.func @transform_6(%arg0: i32) -> (i32, i32) {
    %c0_i32 = arith.constant 0 : i32
    %c0_i32_0 = arith.constant 0 : i32
    %c0_i32_1 = arith.constant 0 : i32
    return %c0_i32, %c0_i32_0 : i32, i32
  }
  func.func @transform_7(%arg0: i32) -> (i32, i32) {
    %c0_i32 = arith.constant 0 : i32
    %c0_i32_0 = arith.constant 0 : i32
    return %arg0, %c0_i32 : i32, i32
  }
}

</mosaic_0001>

<llo_original>
// kernel: tpu_custom_call.1
$region0: #{tpu_custom_call.1}
  #allocation0 [shape = 'u32[]', space=smem, size = 0x4, offset = 0x4, fixed_abs, tag = 'smem constant byte address 0x4 - core index']
  #allocation1 [shape = 'u32[144,128]{1,0:T(1,128)}', space=vmem, size = 0x12000, scoped, tag = 'internal scratch']
  %s0 = inlined_call_operand.hbm [shape: f32[16,128], index: 0, kind: input, shape index: {}]
  %s1 = inlined_call_operand.vmem [shape: f32[1,128], index: 1, kind: input, shape index: {}]
  %s2 = inlined_call_operand.vmem [shape: f32[1,128], index: 2, kind: input, shape index: {}]
  %s3 = inlined_call_operand.hbm [shape: f32[128,256], index: 3, kind: input, shape index: {}]
  %s4 = inlined_call_operand.vmem [shape: f32[1,256], index: 4, kind: input, shape index: {}]
  %s5 = inlined_call_operand.hbm [shape: f32[256,128], index: 5, kind: input, shape index: {}]
  %s6 = inlined_call_operand.vmem [shape: f32[1,128], index: 6, kind: input, shape index: {}]
  %s7 = inlined_call_operand.hbm [shape: f32[16,128], index: 7, kind: output, shape index: {}]
  %s8 = sld [smem:[#allocation0]]
  $region50: #{tpu_custom_call.1} parent=0
    _
  %s10 = ssub.s32 1, %s8
  %s11 = scalar_select 0, %s10, %s8
  $region1: #{tpu_custom_call.1} parent=0
    #allocation2 [shape = 'u8[8192]{0}', space=vmem, size = 0x2000, scoped, tag = 'input window, operand 0, single buffered']
    #allocation3 [shape = 's32[1]{0}', space=sflag, size = 0x4, scoped, tag = 'scoped memory for tpu_custom_call.1']
    #allocation4 [shape = 's32[1]{0}', space=sflag, size = 0x4, scoped, tag = 'scoped memory for tpu_custom_call.1']
    #allocation5 [shape = 'u8[131072]{0}', space=vmem, size = 0x20000, scoped, tag = 'input window, operand 3, single buffered']
    #allocation6 [shape = 's32[1]{0}', space=sflag, size = 0x4, scoped, tag = 'scoped memory for tpu_custom_call.1']
    #allocation7 [shape = 'u8[131072]{0}', space=vmem, size = 0x20000, scoped, tag = 'input window, operand 5, single buffered']
    #allocation8 [shape = 'u8[8192]{0}', space=vmem, size = 0x2000, scoped, tag = 'output window, operand 0, single buffered']
    %12 = vsyncpa [#allocation3], 0
    %13 = vsyncpa [#allocation6], 0
    %14 = vsyncpa [#allocation4], 0
    // Predicated region
    $region2: #{tpu_custom_call.1} parent=1 // pred_check
      _
    $region3: #{tpu_custom_call.1} parent=1 // pred_check_branch
      %16 = sbr.rel (0) target = $region5
    $region4: #{tpu_custom_call.1} parent=1 // pred_region
      %s18 = ssub.s32 256, 256
      %19 = vsyncadd [#allocation3], %s18
      %s20 = sshll.u32 [#allocation2], 4
      %s21 = int_to_ptr.vmem [resolvable:$true] %s20
      %26 = dma.hbm_to_vmem [thread:$0]  %s0, 256, %s21, [#allocation3], 128, 128, 8
    $region5: #{tpu_custom_call.1} parent=1 // pred_fallthru
      _
    // Predicated region
    $region6: #{tpu_custom_call.1} parent=1 // pred_check
      _
    $region7: #{tpu_custom_call.1} parent=1 // pred_check_branch
      %28 = sbr.rel (0) target = $region9
    $region8: #{tpu_custom_call.1} parent=1 // pred_region
      _
    $region9: #{tpu_custom_call.1} parent=1 // pred_fallthru
      _
    // Predicated region
    $region10: #{tpu_custom_call.1} parent=1 // pred_check
      _
    $region11: #{tpu_custom_call.1} parent=1 // pred_check_branch
      %30 = sbr.rel (0) target = $region13
    $region12: #{tpu_custom_call.1} parent=1 // pred_region
      _
    $region13: #{tpu_custom_call.1} parent=1 // pred_fallthru
      _
    // Predicated region
    $region14: #{tpu_custom_call.1} parent=1 // pred_check
      _
    $region15: #{tpu_custom_call.1} parent=1 // pred_check_branch
      %32 = sbr.rel (0) target = $region17
    $region16: #{tpu_custom_call.1} parent=1 // pred_region
      %s34 = ssub.s32 4096, 4096
      %35 = vsyncadd [#allocation6], %s34
      %s36 = sshll.u32 [#allocation5], 4
      %s37 = int_to_ptr.vmem [resolvable:$true] %s36
      %42 = dma.hbm_to_vmem [thread:$0]  %s3, 4096, %s37, [#allocation6], 256, 256, 16
    $region17: #{tpu_custom_call.1} parent=1 // pred_fallthru
      _
    // Predicated region
    $region18: #{tpu_custom_call.1} parent=1 // pred_check
      _
    $region19: #{tpu_custom_call.1} parent=1 // pred_check_branch
      %44 = sbr.rel (0) target = $region21
    $region20: #{tpu_custom_call.1} parent=1 // pred_region
      _
    $region21: #{tpu_custom_call.1} parent=1 // pred_fallthru
      _
    // Predicated region
    $region22: #{tpu_custom_call.1} parent=1 // pred_check
      _
    $region23: #{tpu_custom_call.1} parent=1 // pred_check_branch
      %46 = sbr.rel (0) target = $region25
    $region24: #{tpu_custom_call.1} parent=1 // pred_region
      %s48 = ssub.s32 4096, 4096
      %49 = vsyncadd [#allocation6], %s48
      %s50 = sshll.u32 [#allocation7], 4
      %s51 = int_to_ptr.vmem [resolvable:$true] %s50
      %56 = dma.hbm_to_vmem [thread:$0]  %s5, 4096, %s51, [#allocation6], 128, 128, 8
    $region25: #{tpu_custom_call.1} parent=1 // pred_fallthru
      _
    // Predicated region
    $region26: #{tpu_custom_call.1} parent=1 // pred_check
      _
    $region27: #{tpu_custom_call.1} parent=1 // pred_check_branch
      %58 = sbr.rel (0) target = $region29
    $region28: #{tpu_custom_call.1} parent=1 // pred_region
      _
    $region29: #{tpu_custom_call.1} parent=1 // pred_fallthru
      _
    // Predicated region
    $region30: #{tpu_custom_call.1} parent=1 // pred_check
      _
    $region31: #{tpu_custom_call.1} parent=1 // pred_check_branch
      %60 = sbr.rel (0) target = $region33
    $region32: #{tpu_custom_call.1} parent=1 // pred_region
      %61 = dma.done [#allocation3], 256
    $region33: #{tpu_custom_call.1} parent=1 // pred_fallthru
      _
    // Predicated region
    $region34: #{tpu_custom_call.1} parent=1 // pred_check
      _
    $region35: #{tpu_custom_call.1} parent=1 // pred_check_branch
      %63 = sbr.rel (0) target = $region37
    $region36: #{tpu_custom_call.1} parent=1 // pred_region
      %64 = dma.done [#allocation6], 4096
    $region37: #{tpu_custom_call.1} parent=1 // pred_fallthru
      _
    // Predicated region
    $region38: #{tpu_custom_call.1} parent=1 // pred_check
      _
    $region39: #{tpu_custom_call.1} parent=1 // pred_check_branch
      %66 = sbr.rel (0) target = $region41
    $region40: #{tpu_custom_call.1} parent=1 // pred_region
      %67 = dma.done [#allocation6], 4096
    $region41: #{tpu_custom_call.1} parent=1 // pred_fallthru
      _
    %v68 = vld [vmem:[#allocation2] sm:$0xff]
    %v69 = vld [vmem:[#allocation2 + $0x8] sm:$0xff]
    %70 = vadd.xlane.f32.xlu0 %v68
    %v71 = vpop.xlane.xlu0 %70
    %72 = vadd.xlane.f32.xlu0 %v69
    %v73 = vpop.xlane.xlu0 %72
    %v74 = vrcp.pop 128.0
    %v75 = vmul.f32 %v71, %v74
    %v76 = vmul.f32 %v73, %v74
    %v77 = vsub.f32 %v68, %v75
    %v78 = vsub.f32 %v69, %v76
    %v79 = vmul.f32 %v77, %v77
    %v80 = vmul.f32 %v78, %v78
    %81 = vadd.xlane.f32.xlu0 %v79
    %v82 = vpop.xlane.xlu0 %81
    %83 = vadd.xlane.f32.xlu0 %v80
    %v84 = vpop.xlane.xlu0 %83
    %v85 = vmul.f32 %v82, %v74
    %v86 = vmul.f32 %v84, %v74
    %v87 = vadd.f32 %v85, 1e-05
    %v88 = vadd.f32 %v86, 1e-05
    %v89 = vrsqrt.pop %v87
    %v90 = vrsqrt.pop %v88
    %v91 = vmul.f32 %v77, %v89
    %v92 = vmul.f32 %v78, %v90
    %v93 = vld [vmem:[%s1] sm:$0x1]
    %v95 = vlaneseq
    %v96 = vshrl.u32 %v95, 7
    %v97 = vsub.s32 0, %v96
    %v98 = vrot.slane %v93, %v97
    %v100 = vmul.f32 %v91, %v98
    %v101 = vmul.f32 %v92, %v98
    %v102 = vld [vmem:[%s2] sm:$0x1]
    %v104 = vlaneseq
    %v105 = vshrl.u32 %v104, 7
    %v106 = vsub.s32 0, %v105
    %v107 = vrot.slane %v102, %v106
    %v109 = vadd.f32 %v100, %v107
    %v110 = vadd.f32 %v101, %v107
    %v111 = vld [vmem:[#allocation5] sm:$0xff]
    %v112 = vld [vmem:[#allocation5 + $0x8] sm:$0xff]
    %v113 = vld [vmem:[#allocation5 + $0x10] sm:$0xff]
    %v114 = vld [vmem:[#allocation5 + $0x18] sm:$0xff]
    %v115 = vld [vmem:[#allocation5 + $0x20] sm:$0xff]
    %v116 = vld [vmem:[#allocation5 + $0x28] sm:$0xff]
    %v117 = vld [vmem:[#allocation5 + $0x30] sm:$0xff]
    %v118 = vld [vmem:[#allocation5 + $0x38] sm:$0xff]
    %v119 = vld [vmem:[#allocation5 + $0x40] sm:$0xff]
    %v120 = vld [vmem:[#allocation5 + $0x48] sm:$0xff]
    %v121 = vld [vmem:[#allocation5 + $0x50] sm:$0xff]
    %v122 = vld [vmem:[#allocation5 + $0x58] sm:$0xff]
    %v123 = vld [vmem:[#allocation5 + $0x60] sm:$0xff]
    %v124 = vld [vmem:[#allocation5 + $0x68] sm:$0xff]
    %v125 = vld [vmem:[#allocation5 + $0x70] sm:$0xff]
    %v126 = vld [vmem:[#allocation5 + $0x78] sm:$0xff]
    %v127 = vld [vmem:[#allocation5 + $0x80] sm:$0xff]
    %v128 = vld [vmem:[#allocation5 + $0x88] sm:$0xff]
    %v129 = vld [vmem:[#allocation5 + $0x90] sm:$0xff]
    %v130 = vld [vmem:[#allocation5 + $0x98] sm:$0xff]
    %v131 = vld [vmem:[#allocation5 + $0xa0] sm:$0xff]
    %v132 = vld [vmem:[#allocation5 + $0xa8] sm:$0xff]
    %v133 = vld [vmem:[#allocation5 + $0xb0] sm:$0xff]
    %v134 = vld [vmem:[#allocation5 + $0xb8] sm:$0xff]
    %v135 = vld [vmem:[#allocation5 + $0xc0] sm:$0xff]
    %v136 = vld [vmem:[#allocation5 + $0xc8] sm:$0xff]
    %v137 = vld [vmem:[#allocation5 + $0xd0] sm:$0xff]
    %v138 = vld [vmem:[#allocation5 + $0xd8] sm:$0xff]
    %v139 = vld [vmem:[#allocation5 + $0xe0] sm:$0xff]
    %v140 = vld [vmem:[#allocation5 + $0xe8] sm:$0xff]
    %v141 = vld [vmem:[#allocation5 + $0xf0] sm:$0xff]
    %v142 = vld [vmem:[#allocation5 + $0xf8] sm:$0xff]
    %v143 = vld [vmem:[%s4] sm:$0x3]
    %v145 = vlaneseq
    %v146 = vshrl.u32 %v145, 7
    %v147 = vsub.s32 0, %v146
    %v148 = vrot.slane %v143, %v147
    %v149 = vlaneseq
    %v150 = vshrl.u32 %v149, 7
    %v151 = vsub.s32 1, %v150
    %v152 = vrot.slane %v143, %v151
    %155 = vmatprep.subr.mxu0 %v112
    %156 = vmatpush1.msra.mxu0 %v111
    %157 = vmatprep.subr.mxu0 %v114
    %158 = vmatpush1.msra.mxu0 %v113
    %159 = vmatprep.subr.mxu0 %v116
    %160 = vmatpush1.msra.mxu0 %v115
    %161 = vmatprep.subr.mxu0 %v118
    %162 = vmatpush1.msra.mxu0 %v117
    %163 = vmatprep.subr.mxu0 %v120
    %164 = vmatpush1.msra.mxu0 %v119
    %165 = vmatprep.subr.mxu0 %v122
    %166 = vmatpush1.msra.mxu0 %v121
    %167 = vmatprep.subr.mxu0 %v124
    %168 = vmatpush1.msra.mxu0 %v123
    %169 = vmatprep.subr.mxu0 %v126
    %170 = vmatpush1.msra.mxu0 %v125
    %171 = vmatprep.subr.mxu0 %v128
    %172 = vmatpush1.msra.mxu0 %v127
    %173 = vmatprep.subr.mxu0 %v130
    %174 = vmatpush1.msra.mxu0 %v129
    %175 = vmatprep.subr.mxu0 %v132
    %176 = vmatpush1.msra.mxu0 %v131
    %177 = vmatprep.subr.mxu0 %v134
    %178 = vmatpush1.msra.mxu0 %v133
    %179 = vmatprep.subr.mxu0 %v136
    %180 = vmatpush1.msra.mxu0 %v135
    %181 = vmatprep.subr.mxu0 %v138
    %182 = vmatpush1.msra.mxu0 %v137
    %183 = vmatprep.subr.mxu0 %v140
    %184 = vmatpush1.msra.mxu0 %v139
    %185 = vmatprep.subr.mxu0 %v142
    %186 = vmatpush1.msra.mxu0 %v141
    %187 = vmatprep.subr.mxu0 0.0
    %188 = vmatpush1.msra.mxu0 0.0
    %189 = vmatprep.subr.mxu0 0.0
    %190 = vmatpush1.msra.mxu0 0.0
    %191 = vmatprep.subr.mxu0 0.0
    %192 = vmatpush1.msra.mxu0 0.0
    %193 = vmatprep.subr.mxu0 0.0
    %194 = vmatpush1.msra.mxu0 0.0
    %195 = vmatprep.subr.mxu0 0.0
    %196 = vmatpush1.msra.mxu0 0.0
    %197 = vmatprep.subr.mxu0 0.0
    %198 = vmatpush1.msra.mxu0 0.0
    %199 = vmatprep.subr.mxu0 0.0
    %200 = vmatpush1.msra.mxu0 0.0
    %201 = vmatprep.subr.mxu0 0.0
    %202 = vmatpush1.msra.mxu0 0.0
    %203 = vmatprep.subr.mxu0 0.0
    %204 = vmatpush1.msra.mxu0 0.0
    %205 = vmatprep.subr.mxu0 0.0
    %206 = vmatpush1.msra.mxu0 0.0
    %207 = vmatprep.subr.mxu0 0.0
    %208 = vmatpush1.msra.mxu0 0.0
    %209 = vmatprep.subr.mxu0 0.0
    %210 = vmatpush1.msra.mxu0 0.0
    %211 = vmatprep.subr.mxu0 0.0
    %212 = vmatpush1.msra.mxu0 0.0
    %213 = vmatprep.subr.mxu0 0.0
    %214 = vmatpush1.msra.mxu0 0.0
    %215 = vmatprep.subr.mxu0 0.0
    %216 = vmatpush1.msra.mxu0 0.0
    %217 = vmatprep.subr.mxu0 0.0
    %218 = vmatpush1.msra.mxu0 0.0
    %219 = vmatprep.mubr.f32.mxu0 0.0
    %220 = vmatmul.mubr.f32.gmra.mrb[0].mxu0 %v109
    %v221 = vpop.f32.mrb[0].mxu0
    %v222 = vadd.f32 %v148, %v221
    %v223 = vpop.f32.mrb[0].mxu0
    %v224 = vadd.f32 %v152, %v223
    %225 = vmatprep.mubr.f32.mxu0 0.0
    %226 = vmatmul.mubr.f32.gmra.mrb[0].mxu0 %v110
    %v227 = vpop.f32.mrb[0].mxu0
    %v228 = vadd.f32 %v148, %v227
    %v229 = vpop.f32.mrb[0].mxu0
    %v230 = vadd.f32 %v152, %v229
    %231 = vdwg.mxu0
    %v232 = vmul.f32 %v222, 0.5
    %v233 = vmul.f32 %v224, 0.5
    %v234 = vmul.f32 %v228, 0.5
    %v235 = vmul.f32 %v230, 0.5
    %v236 = vmul.f32 %v222, 0.70710677
    %v237 = vmul.f32 %v224, 0.70710677
    %v238 = vmul.f32 %v228, 0.70710677
    %v239 = vmul.f32 %v230, 0.70710677
    %v240 = verf.f32.pop %v236
    %v241 = verf.f32.pop %v237
    %v242 = verf.f32.pop %v238
    %v243 = verf.f32.pop %v239
    %v244 = vadd.f32 %v240, 1.0
    %v245 = vadd.f32 %v241, 1.0
    %v246 = vadd.f32 %v242, 1.0
    %v247 = vadd.f32 %v243, 1.0
    %v248 = vmul.f32 %v232, %v244
    %v249 = vmul.f32 %v233, %v245
    %v250 = vmul.f32 %v234, %v246
    %v251 = vmul.f32 %v235, %v247
    %v252 = vld [vmem:[#allocation7] sm:$0xff]
    %v253 = vld [vmem:[#allocation7 + $0x8] sm:$0xff]
    %v254 = vld [vmem:[#allocation7 + $0x10] sm:$0xff]
    %v255 = vld [vmem:[#allocation7 + $0x18] sm:$0xff]
    %v256 = vld [vmem:[#allocation7 + $0x20] sm:$0xff]
    %v257 = vld [vmem:[#allocation7 + $0x28] sm:$0xff]
    %v258 = vld [vmem:[#allocation7 + $0x30] sm:$0xff]
    %v259 = vld [vmem:[#allocation7 + $0x38] sm:$0xff]
    %v260 = vld [vmem:[#allocation7 + $0x40] sm:$0xff]
    %v261 = vld [vmem:[#allocation7 + $0x48] sm:$0xff]
    %v262 = vld [vmem:[#allocation7 + $0x50] sm:$0xff]
    %v263 = vld [vmem:[#allocation7 + $0x58] sm:$0xff]
    %v264 = vld [vmem:[#allocation7 + $0x60] sm:$0xff]
    %v265 = vld [vmem:[#allocation7 + $0x68] sm:$0xff]
    %v266 = vld [vmem:[#allocation7 + $0x70] sm:$0xff]
    %v267 = vld [vmem:[#allocation7 + $0x78] sm:$0xff]
    %v268 = vld [vmem:[#allocation7 + $0x80] sm:$0xff]
    %v269 = vld [vmem:[#allocation7 + $0x88] sm:$0xff]
    %v270 = vld [vmem:[#allocation7 + $0x90] sm:$0xff]
    %v271 = vld [vmem:[#allocation7 + $0x98] sm:$0xff]
    %v272 = vld [vmem:[#allocation7 + $0xa0] sm:$0xff]
    %v273 = vld [vmem:[#allocation7 + $0xa8] sm:$0xff]
    %v274 = vld [vmem:[#allocation7 + $0xb0] sm:$0xff]
    %v275 = vld [vmem:[#allocation7 + $0xb8] sm:$0xff]
    %v276 = vld [vmem:[#allocation7 + $0xc0] sm:$0xff]
    %v277 = vld [vmem:[#allocation7 + $0xc8] sm:$0xff]
    %v278 = vld [vmem:[#allocation7 + $0xd0] sm:$0xff]
    %v279 = vld [vmem:[#allocation7 + $0xd8] sm:$0xff]
    %v280 = vld [vmem:[#allocation7 + $0xe0] sm:$0xff]
    %v281 = vld [vmem:[#allocation7 + $0xe8] sm:$0xff]
    %v282 = vld [vmem:[#allocation7 + $0xf0] sm:$0xff]
    %v283 = vld [vmem:[#allocation7 + $0xf8] sm:$0xff]
    %v284 = vld [vmem:[%s6] sm:$0x1]
    %v286 = vlaneseq
    %v287 = vshrl.u32 %v286, 7
    %v288 = vsub.s32 0, %v287
    %v289 = vrot.slane %v284, %v288
    %291 = vmatprep.subr.mxu0 0.0
    %292 = vmatpush1.msra.mxu0 %v252
    %293 = vmatprep.subr.mxu0 0.0
    %294 = vmatpush1.msra.mxu0 %v253
    %295 = vmatprep.subr.mxu0 0.0
    %296 = vmatpush1.msra.mxu0 %v254
    %297 = vmatprep.subr.mxu0 0.0
    %298 = vmatpush1.msra.mxu0 %v255
    %299 = vmatprep.subr.mxu0 0.0
    %300 = vmatpush1.msra.mxu0 %v256
    %301 = vmatprep.subr.mxu0 0.0
    %302 = vmatpush1.msra.mxu0 %v257
    %303 = vmatprep.subr.mxu0 0.0
    %304 = vmatpush1.msra.mxu0 %v258
    %305 = vmatprep.subr.mxu0 0.0
    %306 = vmatpush1.msra.mxu0 %v259
    %307 = vmatprep.subr.mxu0 0.0
    %308 = vmatpush1.msra.mxu0 %v260
    %309 = vmatprep.subr.mxu0 0.0
    %310 = vmatpush1.msra.mxu0 %v261
    %311 = vmatprep.subr.mxu0 0.0
    %312 = vmatpush1.msra.mxu0 %v262
    %313 = vmatprep.subr.mxu0 0.0
    %314 = vmatpush1.msra.mxu0 %v263
    %315 = vmatprep.subr.mxu0 0.0
    %316 = vmatpush1.msra.mxu0 %v264
    %317 = vmatprep.subr.mxu0 0.0
    %318 = vmatpush1.msra.mxu0 %v265
    %319 = vmatprep.subr.mxu0 0.0
    %320 = vmatpush1.msra.mxu0 %v266
    %321 = vmatprep.subr.mxu0 0.0
    %322 = vmatpush1.msra.mxu0 %v267
    %323 = vmatprep.subr.mxu0 0.0
    %324 = vmatpush1.msra.mxu0 %v268
    %325 = vmatprep.subr.mxu0 0.0
    %326 = vmatpush1.msra.mxu0 %v269
    %327 = vmatprep.subr.mxu0 0.0
    %328 = vmatpush1.msra.mxu0 %v270
    %329 = vmatprep.subr.mxu0 0.0
    %330 = vmatpush1.msra.mxu0 %v271
    %331 = vmatprep.subr.mxu0 0.0
    %332 = vmatpush1.msra.mxu0 %v272
    %333 = vmatprep.subr.mxu0 0.0
    %334 = vmatpush1.msra.mxu0 %v273
    %335 = vmatprep.subr.mxu0 0.0
    %336 = vmatpush1.msra.mxu0 %v274
    %337 = vmatprep.subr.mxu0 0.0
    %338 = vmatpush1.msra.mxu0 %v275
    %339 = vmatprep.subr.mxu0 0.0
    %340 = vmatpush1.msra.mxu0 %v276
    %341 = vmatprep.subr.mxu0 0.0
    %342 = vmatpush1.msra.mxu0 %v277
    %343 = vmatprep.subr.mxu0 0.0
    %344 = vmatpush1.msra.mxu0 %v278
    %345 = vmatprep.subr.mxu0 0.0
    %346 = vmatpush1.msra.mxu0 %v279
    %347 = vmatprep.subr.mxu0 0.0
    %348 = vmatpush1.msra.mxu0 %v280
    %349 = vmatprep.subr.mxu0 0.0
    %350 = vmatpush1.msra.mxu0 %v281
    %351 = vmatprep.subr.mxu0 0.0
    %352 = vmatpush1.msra.mxu0 %v282
    %353 = vmatprep.subr.mxu0 0.0
    %354 = vmatpush1.msra.mxu0 %v283
    %355 = vmatprep.mubr.f32.mxu0 %v249
    %356 = vmatmul.mubr.f32.gmra.mrb[0].mxu0 %v248
    %v357 = vpop.f32.mrb[0].mxu0
    %v358 = vadd.f32 %v289, %v357
    %v359 = vpop.f32.mrb[0].mxu0
    %360 = vmatprep.mubr.f32.mxu0 %v251
    %361 = vmatmul.mubr.f32.gmra.mrb[0].mxu0 %v250
    %v362 = vpop.f32.mrb[0].mxu0
    %v363 = vadd.f32 %v289, %v362
    %v364 = vpop.f32.mrb[0].mxu0
    %365 = vdwg.mxu0
    %v366 = vmul.f32 %v358, 0.5
    %v367 = vmul.f32 %v363, 0.5
    %v368 = vmul.f32 %v358, 0.70710677
    %v369 = vmul.f32 %v363, 0.70710677
    %v370 = verf.f32.pop %v368
    %v371 = verf.f32.pop %v369
    %v372 = vadd.f32 %v370, 1.0
    %v373 = vadd.f32 %v371, 1.0
    %v374 = vmul.f32 %v366, %v372
    %v375 = vmul.f32 %v367, %v373
    %v376 = vadd.f32 %v374, %v109
    %v377 = vadd.f32 %v375, %v110
    %378 = vst [vmem:[#allocation8] sm:$0xff] %v376
    %379 = vst [vmem:[#allocation8 + $0x8] sm:$0xff] %v377
    // Predicated region
    $region42: #{tpu_custom_call.1} parent=1 // pred_check
      _
    $region43: #{tpu_custom_call.1} parent=1 // pred_check_branch
      %381 = sbr.rel (0) target = $region45
    $region44: #{tpu_custom_call.1} parent=1 // pred_region
      %s383 = ssub.s32 256, 256
      %384 = vsyncadd [#allocation4], %s383
      %s385 = sshll.u32 [#allocation8], 4
      %s386 = int_to_ptr.vmem [resolvable:$true] %s385
      %391 = dma.vmem_to_hbm [thread:$0]  %s386, 256, %s7, [#allocation4], 128, 128, 8
    $region45: #{tpu_custom_call.1} parent=1 // pred_fallthru
      _
    // Predicated region
    $region46: #{tpu_custom_call.1} parent=1 // pred_check
      _
    $region47: #{tpu_custom_call.1} parent=1 // pred_check_branch
      %393 = sbr.rel (0) target = $region49
    $region48: #{tpu_custom_call.1} parent=1 // pred_region
      %394 = dma.done [#allocation4], 256
    $region49: #{tpu_custom_call.1} parent=1 // pred_fallthru
      _
    %395 = vsyncpa [#allocation3], 1
    %396 = vsyncpa [#allocation6], 1
    %397 = vsyncpa [#allocation4], 1

// kernel: tpu_custom_call.1
$region0: #{tpu_custom_call.1}
  #allocation0 [shape = 'u32[]', space=smem, size = 0x4, offset = 0x4, fixed_abs, tag = 'smem constant byte address 0x4 - core index']
  #allocation1 [shape = 'u32[144,128]{1,0:T(1,128)}', space=vmem, size = 0x12000, scoped, tag = 'internal scratch']
  %s0 = inlined_call_operand.hbm [shape: f32[16,128], index: 0, kind: input, shape index: {}]
  %s1 = inlined_call_operand.vmem [shape: f32[1,128], index: 1, kind: input, shape index: {}]
  %s2 = inlined_call_operand.vmem [shape: f32[1,128], index: 2, kind: input, shape index: {}]
  %s3 = inlined_call_operand.hbm [shape: f32[128,256], index: 3, kind: input, shape index: {}]
  %s4 = inlined_call_operand.vmem [shape: f32[1,256], index: 4, kind: input, shape index: {}]
  %s5 = inlined_call_operand.hbm [shape: f32[256,128], index: 5, kind: input, shape index: {}]
  %s6 = inlined_call_operand.vmem [shape: f32[1,128], index: 6, kind: input, shape index: {}]
  %s7 = inlined_call_operand.hbm [shape: f32[16,128], index: 7, kind: output, shape index: {}]
  %s8 = sld [smem:[#allocation0]]
  $region50: #{tpu_custom_call.1} parent=0
    _
  %s10 = ssub.s32 1, %s8
  %s11 = scalar_select 0, %s10, %s8
  $region1: #{tpu_custom_call.1} parent=0
    #allocation2 [shape = 'u8[8192]{0}', space=vmem, size = 0x2000, scoped, tag = 'input window, operand 0, single buffered']
    #allocation3 [shape = 's32[1]{0}', space=sflag, size = 0x4, scoped, tag = 'scoped memory for tpu_custom_call.1']
    #allocation4 [shape = 's32[1]{0}', space=sflag, size = 0x4, scoped, tag = 'scoped memory for tpu_custom_call.1']
    #allocation5 [shape = 'u8[131072]{0}', space=vmem, size = 0x20000, scoped, tag = 'input window, operand 3, single buffered']
    #allocation6 [shape = 's32[1]{0}', space=sflag, size = 0x4, scoped, tag = 'scoped memory for tpu_custom_call.1']
    #allocation7 [shape = 'u8[131072]{0}', space=vmem, size = 0x20000, scoped, tag = 'input window, operand 5, single buffered']
    #allocation8 [shape = 'u8[8192]{0}', space=vmem, size = 0x2000, scoped, tag = 'output window, operand 0, single buffered']
    %12 = vsyncpa [#allocation3], 0
    %13 = vsyncpa [#allocation6], 0
    %14 = vsyncpa [#allocation4], 0
    // Predicated region
    $region2: #{tpu_custom_call.1} parent=1 // pred_check
      _
    $region3: #{tpu_custom_call.1} parent=1 // pred_check_branch
      %16 = sbr.rel (0) target = $region5
    $region4: #{tpu_custom_call.1} parent=1 // pred_region
      %s18 = ssub.s32 256, 256
      %19 = vsyncadd [#allocation3], %s18
      %s20 = sshll.u32 [#allocation2], 4
      %s21 = int_to_ptr.vmem [resolvable:$true] %s20
      %26 = dma.hbm_to_vmem [thread:$0]  %s0, 256, %s21, [#allocation3], 128, 128, 8
    $region5: #{tpu_custom_call.1} parent=1 // pred_fallthru
      _
    // Predicated region
    $region6: #{tpu_custom_call.1} parent=1 // pred_check
      _
    $region7: #{tpu_custom_call.1} parent=1 // pred_check_branch
      %28 = sbr.rel (0) target = $region9
    $region8: #{tpu_custom_call.1} parent=1 // pred_region
      _
    $region9: #{tpu_custom_call.1} parent=1 // pred_fallthru
      _
    // Predicated region
    $region10: #{tpu_custom_call.1} parent=1 // pred_check
      _
    $region11: #{tpu_custom_call.1} parent=1 // pred_check_branch
      %30 = sbr.rel (0) target = $region13
    $region12: #{tpu_custom_call.1} parent=1 // pred_region
      _
    $region13: #{tpu_custom_call.1} parent=1 // pred_fallthru
      _
    // Predicated region
    $region14: #{tpu_custom_call.1} parent=1 // pred_check
      _
    $region15: #{tpu_custom_call.1} parent=1 // pred_check_branch
      %32 = sbr.rel (0) target = $region17
    $region16: #{tpu_custom_call.1} parent=1 // pred_region
      %s34 = ssub.s32 4096, 4096
      %35 = vsyncadd [#allocation6], %s34
      %s36 = sshll.u32 [#allocation5], 4
      %s37 = int_to_ptr.vmem [resolvable:$true] %s36
      %42 = dma.hbm_to_vmem [thread:$0]  %s3, 4096, %s37, [#allocation6], 256, 256, 16
    $region17: #{tpu_custom_call.1} parent=1 // pred_fallthru
      _
    // Predicated region
    $region18: #{tpu_custom_call.1} parent=1 // pred_check
      _
    $region19: #{tpu_custom_call.1} parent=1 // pred_check_branch
      %44 = sbr.rel (0) target = $region21
    $region20: #{tpu_custom_call.1} parent=1 // pred_region
      _
    $region21: #{tpu_custom_call.1} parent=1 // pred_fallthru
      _
    // Predicated region
    $region22: #{tpu_custom_call.1} parent=1 // pred_check
      _
    $region23: #{tpu_custom_call.1} parent=1 // pred_check_branch
      %46 = sbr.rel (0) target = $region25
    $region24: #{tpu_custom_call.1} parent=1 // pred_region
      %s48 = ssub.s32 4096, 4096
      %49 = vsyncadd [#allocation6], %s48
      %s50 = sshll.u32 [#allocation7], 4
      %s51 = int_to_ptr.vmem [resolvable:$true] %s50
      %56 = dma.hbm_to_vmem [thread:$0]  %s5, 4096, %s51, [#allocation6], 128, 128, 8
    $region25: #{tpu_custom_call.1} parent=1 // pred_fallthru
      _
    // Predicated region
    $region26: #{tpu_custom_call.1} parent=1 // pred_check
      _
    $region27: #{tpu_custom_call.1} parent=1 // pred_check_branch
      %58 = sbr.rel (0) target = $region29
    $region28: #{tpu_custom_call.1} parent=1 // pred_region
      _
    $region29: #{tpu_custom_call.1} parent=1 // pred_fallthru
      _
    // Predicated region
    $region30: #{tpu_custom_call.1} parent=1 // pred_check
      _
    $region31: #{tpu_custom_call.1} parent=1 // pred_check_branch
      %60 = sbr.rel (0) target = $region33
    $region32: #{tpu_custom_call.1} parent=1 // pred_region
      %61 = dma.done [#allocation3], 256
    $region33: #{tpu_custom_call.1} parent=1 // pred_fallthru
      _
    // Predicated region
    $region34: #{tpu_custom_call.1} parent=1 // pred_check
      _
    $region35: #{tpu_custom_call.1} parent=1 // pred_check_branch
      %63 = sbr.rel (0) target = $region37
    $region36: #{tpu_custom_call.1} parent=1 // pred_region
      %64 = dma.done [#allocation6], 4096
    $region37: #{tpu_custom_call.1} parent=1 // pred_fallthru
      _
    // Predicated region
    $region38: #{tpu_custom_call.1} parent=1 // pred_check
      _
    $region39: #{tpu_custom_call.1} parent=1 // pred_check_branch
      %66 = sbr.rel (0) target = $region41
    $region40: #{tpu_custom_call.1} parent=1 // pred_region
      %67 = dma.done [#allocation6], 4096
    $region41: #{tpu_custom_call.1} parent=1 // pred_fallthru
      _
    %v68 = vld [vmem:[#allocation2] sm:$0xff]
    %v69 = vld [vmem:[#allocation2 + $0x8] sm:$0xff]
    %70 = vadd.xlane.f32.xlu0 %v68
    %v71 = vpop.xlane.xlu0 %70
    %72 = vadd.xlane.f32.xlu0 %v69
    %v73 = vpop.xlane.xlu0 %72
    %v74 = vrcp.pop 128.0
    %v75 = vmul.f32 %v71, %v74
    %v76 = vmul.f32 %v73, %v74
    %v77 = vsub.f32 %v68, %v75
    %v78 = vsub.f32 %v69, %v76
    %v79 = vmul.f32 %v77, %v77
    %v80 = vmul.f32 %v78, %v78
    %81 = vadd.xlane.f32.xlu0 %v79
    %v82 = vpop.xlane.xlu0 %81
    %83 = vadd.xlane.f32.xlu0 %v80
    %v84 = vpop.xlane.xlu0 %83
    %v85 = vmul.f32 %v82, %v74
    %v86 = vmul.f32 %v84, %v74
    %v87 = vadd.f32 %v85, 1e-05
    %v88 = vadd.f32 %v86, 1e-05
    %v89 = vrsqrt.pop %v87
    %v90 = vrsqrt.pop %v88
    %v91 = vmul.f32 %v77, %v89
    %v92 = vmul.f32 %v78, %v90
    %v93 = vld [vmem:[%s1] sm:$0x1]
    %v95 = vlaneseq
    %v96 = vshrl.u32 %v95, 7
    %v97 = vsub.s32 0, %v96
    %v98 = vrot.slane %v93, %v97
    %v100 = vmul.f32 %v91, %v98
    %v101 = vmul.f32 %v92, %v98
    %v102 = vld [vmem:[%s2] sm:$0x1]
    %v104 = vlaneseq
    %v105 = vshrl.u32 %v104, 7
    %v106 = vsub.s32 0, %v105
    %v107 = vrot.slane %v102, %v106
    %v109 = vadd.f32 %v100, %v107
    %v110 = vadd.f32 %v101, %v107
    %v111 = vld [vmem:[#allocation5] sm:$0xff]
    %v112 = vld [vmem:[#allocation5 + $0x8] sm:$0xff]
    %v113 = vld [vmem:[#allocation5 + $0x10] sm:$0xff]
    %v114 = vld [vmem:[#allocation5 + $0x18] sm:$0xff]
    %v115 = vld [vmem:[#allocation5 + $0x20] sm:$0xff]
    %v116 = vld [vmem:[#allocation5 + $0x28] sm:$0xff]
    %v117 = vld [vmem:[#allocation5 + $0x30] sm:$0xff]
    %v118 = vld [vmem:[#allocation5 + $0x38] sm:$0xff]
    %v119 = vld [vmem:[#allocation5 + $0x40] sm:$0xff]
    %v120 = vld [vmem:[#allocation5 + $0x48] sm:$0xff]
    %v121 = vld [vmem:[#allocation5 + $0x50] sm:$0xff]
    %v122 = vld [vmem:[#allocation5 + $0x58] sm:$0xff]
    %v123 = vld [vmem:[#allocation5 + $0x60] sm:$0xff]
    %v124 = vld [vmem:[#allocation5 + $0x68] sm:$0xff]
    %v125 = vld [vmem:[#allocation5 + $0x70] sm:$0xff]
    %v126 = vld [vmem:[#allocation5 + $0x78] sm:$0xff]
    %v127 = vld [vmem:[#allocation5 + $0x80] sm:$0xff]
    %v128 = vld [vmem:[#allocation5 + $0x88] sm:$0xff]
    %v129 = vld [vmem:[#allocation5 + $0x90] sm:$0xff]
    %v130 = vld [vmem:[#allocation5 + $0x98] sm:$0xff]
    %v131 = vld [vmem:[#allocation5 + $0xa0] sm:$0xff]
    %v132 = vld [vmem:[#allocation5 + $0xa8] sm:$0xff]
    %v133 = vld [vmem:[#allocation5 + $0xb0] sm:$0xff]
    %v134 = vld [vmem:[#allocation5 + $0xb8] sm:$0xff]
    %v135 = vld [vmem:[#allocation5 + $0xc0] sm:$0xff]
    %v136 = vld [vmem:[#allocation5 + $0xc8] sm:$0xff]
    %v137 = vld [vmem:[#allocation5 + $0xd0] sm:$0xff]
    %v138 = vld [vmem:[#allocation5 + $0xd8] sm:$0xff]
    %v139 = vld [vmem:[#allocation5 + $0xe0] sm:$0xff]
    %v140 = vld [vmem:[#allocation5 + $0xe8] sm:$0xff]
    %v141 = vld [vmem:[#allocation5 + $0xf0] sm:$0xff]
    %v142 = vld [vmem:[#allocation5 + $0xf8] sm:$0xff]
    %v143 = vld [vmem:[%s4] sm:$0x3]
    %v145 = vlaneseq
    %v146 = vshrl.u32 %v145, 7
    %v147 = vsub.s32 0, %v146
    %v148 = vrot.slane %v143, %v147
    %v149 = vlaneseq
    %v150 = vshrl.u32 %v149, 7
    %v151 = vsub.s32 1, %v150
    %v152 = vrot.slane %v143, %v151
    %155 = vmatprep.subr.mxu0 %v112
    %156 = vmatpush1.msra.mxu0 %v111
    %157 = vmatprep.subr.mxu0 %v114
    %158 = vmatpush1.msra.mxu0 %v113
    %159 = vmatprep.subr.mxu0 %v116
    %160 = vmatpush1.msra.mxu0 %v115
    %161 = vmatprep.subr.mxu0 %v118
    %162 = vmatpush1.msra.mxu0 %v117
    %163 = vmatprep.subr.mxu0 %v120
    %164 = vmatpush1.msra.mxu0 %v119
    %165 = vmatprep.subr.mxu0 %v122
    %166 = vmatpush1.msra.mxu0 %v121
    %167 = vmatprep.subr.mxu0 %v124
    %168 = vmatpush1.msra.mxu0 %v123
    %169 = vmatprep.subr.mxu0 %v126
    %170 = vmatpush1.msra.mxu0 %v125
    %171 = vmatprep.subr.mxu0 %v128
    %172 = vmatpush1.msra.mxu0 %v127
    %173 = vmatprep.subr.mxu0 %v130
    %174 = vmatpush1.msra.mxu0 %v129
    %175 = vmatprep.subr.mxu0 %v132
    %176 = vmatpush1.msra.mxu0 %v131
    %177 = vmatprep.subr.mxu0 %v134
    %178 = vmatpush1.msra.mxu0 %v133
    %179 = vmatprep.subr.mxu0 %v136
    %180 = vmatpush1.msra.mxu0 %v135
    %181 = vmatprep.subr.mxu0 %v138
    %182 = vmatpush1.msra.mxu0 %v137
    %183 = vmatprep.subr.mxu0 %v140
    %184 = vmatpush1.msra.mxu0 %v139
    %185 = vmatprep.subr.mxu0 %v142
    %186 = vmatpush1.msra.mxu0 %v141
    %187 = vmatprep.subr.mxu0 0.0
    %188 = vmatpush1.msra.mxu0 0.0
    %189 = vmatprep.subr.mxu0 0.0
    %190 = vmatpush1.msra.mxu0 0.0
    %191 = vmatprep.subr.mxu0 0.0
    %192 = vmatpush1.msra.mxu0 0.0
    %193 = vmatprep.subr.mxu0 0.0
    %194 = vmatpush1.msra.mxu0 0.0
    %195 = vmatprep.subr.mxu0 0.0
    %196 = vmatpush1.msra.mxu0 0.0
    %197 = vmatprep.subr.mxu0 0.0
    %198 = vmatpush1.msra.mxu0 0.0
    %199 = vmatprep.subr.mxu0 0.0
    %200 = vmatpush1.msra.mxu0 0.0
    %201 = vmatprep.subr.mxu0 0.0
    %202 = vmatpush1.msra.mxu0 0.0
    %203 = vmatprep.subr.mxu0 0.0
    %204 = vmatpush1.msra.mxu0 0.0
    %205 = vmatprep.subr.mxu0 0.0
    %206 = vmatpush1.msra.mxu0 0.0
    %207 = vmatprep.subr.mxu0 0.0
    %208 = vmatpush1.msra.mxu0 0.0
    %209 = vmatprep.subr.mxu0 0.0
    %210 = vmatpush1.msra.mxu0 0.0
    %211 = vmatprep.subr.mxu0 0.0
    %212 = vmatpush1.msra.mxu0 0.0
    %213 = vmatprep.subr.mxu0 0.0
    %214 = vmatpush1.msra.mxu0 0.0
    %215 = vmatprep.subr.mxu0 0.0
    %216 = vmatpush1.msra.mxu0 0.0
    %217 = vmatprep.subr.mxu0 0.0
    %218 = vmatpush1.msra.mxu0 0.0
    %219 = vmatprep.mubr.f32.mxu0 0.0
    %220 = vmatmul.mubr.f32.gmra.mrb[0].mxu0 %v109
    %v221 = vpop.f32.mrb[0].mxu0
    %v222 = vadd.f32 %v148, %v221
    %v223 = vpop.f32.mrb[0].mxu0
    %v224 = vadd.f32 %v152, %v223
    %225 = vmatprep.mubr.f32.mxu0 0.0
    %226 = vmatmul.mubr.f32.gmra.mrb[0].mxu0 %v110
    %v227 = vpop.f32.mrb[0].mxu0
    %v228 = vadd.f32 %v148, %v227
    %v229 = vpop.f32.mrb[0].mxu0
    %v230 = vadd.f32 %v152, %v229
    %231 = vdwg.mxu0
    %v232 = vmul.f32 %v222, 0.5
    %v233 = vmul.f32 %v224, 0.5
    %v234 = vmul.f32 %v228, 0.5
    %v235 = vmul.f32 %v230, 0.5
    %v236 = vmul.f32 %v222, 0.70710677
    %v237 = vmul.f32 %v224, 0.70710677
    %v238 = vmul.f32 %v228, 0.70710677
    %v239 = vmul.f32 %v230, 0.70710677
    %v240 = verf.f32.pop %v236
    %v241 = verf.f32.pop %v237
    %v242 = verf.f32.pop %v238
    %v243 = verf.f32.pop %v239
    %v244 = vadd.f32 %v240, 1.0
    %v245 = vadd.f32 %v241, 1.0
    %v246 = vadd.f32 %v242, 1.0
    %v247 = vadd.f32 %v243, 1.0
    %v248 = vmul.f32 %v232, %v244
    %v249 = vmul.f32 %v233, %v245
    %v250 = vmul.f32 %v234, %v246
    %v251 = vmul.f32 %v235, %v247
    %v252 = vld [vmem:[#allocation7] sm:$0xff]
    %v253 = vld [vmem:[#allocation7 + $0x8] sm:$0xff]
    %v254 = vld [vmem:[#allocation7 + $0x10] sm:$0xff]
    %v255 = vld [vmem:[#allocation7 + $0x18] sm:$0xff]
    %v256 = vld [vmem:[#allocation7 + $0x20] sm:$0xff]
    %v257 = vld [vmem:[#allocation7 + $0x28] sm:$0xff]
    %v258 = vld [vmem:[#allocation7 + $0x30] sm:$0xff]
    %v259 = vld [vmem:[#allocation7 + $0x38] sm:$0xff]
    %v260 = vld [vmem:[#allocation7 + $0x40] sm:$0xff]
    %v261 = vld [vmem:[#allocation7 + $0x48] sm:$0xff]
    %v262 = vld [vmem:[#allocation7 + $0x50] sm:$0xff]
    %v263 = vld [vmem:[#allocation7 + $0x58] sm:$0xff]
    %v264 = vld [vmem:[#allocation7 + $0x60] sm:$0xff]
    %v265 = vld [vmem:[#allocation7 + $0x68] sm:$0xff]
    %v266 = vld [vmem:[#allocation7 + $0x70] sm:$0xff]
    %v267 = vld [vmem:[#allocation7 + $0x78] sm:$0xff]
    %v268 = vld [vmem:[#allocation7 + $0x80] sm:$0xff]
    %v269 = vld [vmem:[#allocation7 + $0x88] sm:$0xff]
    %v270 = vld [vmem:[#allocation7 + $0x90] sm:$0xff]
    %v271 = vld [vmem:[#allocation7 + $0x98] sm:$0xff]
    %v272 = vld [vmem:[#allocation7 + $0xa0] sm:$0xff]
    %v273 = vld [vmem:[#allocation7 + $0xa8] sm:$0xff]
    %v274 = vld [vmem:[#allocation7 + $0xb0] sm:$0xff]
    %v275 = vld [vmem:[#allocation7 + $0xb8] sm:$0xff]
    %v276 = vld [vmem:[#allocation7 + $0xc0] sm:$0xff]
    %v277 = vld [vmem:[#allocation7 + $0xc8] sm:$0xff]
    %v278 = vld [vmem:[#allocation7 + $0xd0] sm:$0xff]
    %v279 = vld [vmem:[#allocation7 + $0xd8] sm:$0xff]
    %v280 = vld [vmem:[#allocation7 + $0xe0] sm:$0xff]
    %v281 = vld [vmem:[#allocation7 + $0xe8] sm:$0xff]
    %v282 = vld [vmem:[#allocation7 + $0xf0] sm:$0xff]
    %v283 = vld [vmem:[#allocation7 + $0xf8] sm:$0xff]
    %v284 = vld [vmem:[%s6] sm:$0x1]
    %v286 = vlaneseq
    %v287 = vshrl.u32 %v286, 7
    %v288 = vsub.s32 0, %v287
    %v289 = vrot.slane %v284, %v288
    %291 = vmatprep.subr.mxu0 0.0
    %292 = vmatpush1.msra.mxu0 %v252
    %293 = vmatprep.subr.mxu0 0.0
    %294 = vmatpush1.msra.mxu0 %v253
    %295 = vmatprep.subr.mxu0 0.0
    %296 = vmatpush1.msra.mxu0 %v254
    %297 = vmatprep.subr.mxu0 0.0
    %298 = vmatpush1.msra.mxu0 %v255
    %299 = vmatprep.subr.mxu0 0.0
    %300 = vmatpush1.msra.mxu0 %v256
    %301 = vmatprep.subr.mxu0 0.0
    %302 = vmatpush1.msra.mxu0 %v257
    %303 = vmatprep.subr.mxu0 0.0
    %304 = vmatpush1.msra.mxu0 %v258
    %305 = vmatprep.subr.mxu0 0.0
    %306 = vmatpush1.msra.mxu0 %v259
    %307 = vmatprep.subr.mxu0 0.0
    %308 = vmatpush1.msra.mxu0 %v260
    %309 = vmatprep.subr.mxu0 0.0
    %310 = vmatpush1.msra.mxu0 %v261
    %311 = vmatprep.subr.mxu0 0.0
    %312 = vmatpush1.msra.mxu0 %v262
    %313 = vmatprep.subr.mxu0 0.0
    %314 = vmatpush1.msra.mxu0 %v263
    %315 = vmatprep.subr.mxu0 0.0
    %316 = vmatpush1.msra.mxu0 %v264
    %317 = vmatprep.subr.mxu0 0.0
    %318 = vmatpush1.msra.mxu0 %v265
    %319 = vmatprep.subr.mxu0 0.0
    %320 = vmatpush1.msra.mxu0 %v266
    %321 = vmatprep.subr.mxu0 0.0
    %322 = vmatpush1.msra.mxu0 %v267
    %323 = vmatprep.subr.mxu0 0.0
    %324 = vmatpush1.msra.mxu0 %v268
    %325 = vmatprep.subr.mxu0 0.0
    %326 = vmatpush1.msra.mxu0 %v269
    %327 = vmatprep.subr.mxu0 0.0
    %328 = vmatpush1.msra.mxu0 %v270
    %329 = vmatprep.subr.mxu0 0.0
    %330 = vmatpush1.msra.mxu0 %v271
    %331 = vmatprep.subr.mxu0 0.0
    %332 = vmatpush1.msra.mxu0 %v272
    %333 = vmatprep.subr.mxu0 0.0
    %334 = vmatpush1.msra.mxu0 %v273
    %335 = vmatprep.subr.mxu0 0.0
    %336 = vmatpush1.msra.mxu0 %v274
    %337 = vmatprep.subr.mxu0 0.0
    %338 = vmatpush1.msra.mxu0 %v275
    %339 = vmatprep.subr.mxu0 0.0
    %340 = vmatpush1.msra.mxu0 %v276
    %341 = vmatprep.subr.mxu0 0.0
    %342 = vmatpush1.msra.mxu0 %v277
    %343 = vmatprep.subr.mxu0 0.0
    %344 = vmatpush1.msra.mxu0 %v278
    %345 = vmatprep.subr.mxu0 0.0
    %346 = vmatpush1.msra.mxu0 %v279
    %347 = vmatprep.subr.mxu0 0.0
    %348 = vmatpush1.msra.mxu0 %v280
    %349 = vmatprep.subr.mxu0 0.0
    %350 = vmatpush1.msra.mxu0 %v281
    %351 = vmatprep.subr.mxu0 0.0
    %352 = vmatpush1.msra.mxu0 %v282
    %353 = vmatprep.subr.mxu0 0.0
    %354 = vmatpush1.msra.mxu0 %v283
    %355 = vmatprep.mubr.f32.mxu0 %v249
    %356 = vmatmul.mubr.f32.gmra.mrb[0].mxu0 %v248
    %v357 = vpop.f32.mrb[0].mxu0
    %v358 = vadd.f32 %v289, %v357
    %v359 = vpop.f32.mrb[0].mxu0
    %360 = vmatprep.mubr.f32.mxu0 %v251
    %361 = vmatmul.mubr.f32.gmra.mrb[0].mxu0 %v250
    %v362 = vpop.f32.mrb[0].mxu0
    %v363 = vadd.f32 %v289, %v362
    %v364 = vpop.f32.mrb[0].mxu0
    %365 = vdwg.mxu0
    %v366 = vmul.f32 %v358, 0.5
    %v367 = vmul.f32 %v363, 0.5
    %v368 = vmul.f32 %v358, 0.70710677
    %v369 = vmul.f32 %v363, 0.70710677
    %v370 = verf.f32.pop %v368
    %v371 = verf.f32.pop %v369
    %v372 = vadd.f32 %v370, 1.0
    %v373 = vadd.f32 %v371, 1.0
    %v374 = vmul.f32 %v366, %v372
    %v375 = vmul.f32 %v367, %v373
    %v376 = vadd.f32 %v374, %v109
    %v377 = vadd.f32 %v375, %v110
    %378 = vst [vmem:[#allocation8] sm:$0xff] %v376
    %379 = vst [vmem:[#allocation8 + $0x8] sm:$0xff] %v377
    // Predicated region
    $region42: #{tpu_custom_call.1} parent=1 // pred_check
      _
    $region43: #{tpu_custom_call.1} parent=1 // pred_check_branch
      %381 = sbr.rel (0) target = $region45
    $region44: #{tpu_custom_call.1} parent=1 // pred_region
      %s383 = ssub.s32 256, 256
      %384 = vsyncadd [#allocation4], %s383
      %s385 = sshll.u32 [#allocation8], 4
      %s386 = int_to_ptr.vmem [resolvable:$true] %s385
      %391 = dma.vmem_to_hbm [thread:$0]  %s386, 256, %s7, [#allocation4], 128, 128, 8
    $region45: #{tpu_custom_call.1} parent=1 // pred_fallthru
      _
    // Predicated region
    $region46: #{tpu_custom_call.1} parent=1 // pred_check
      _
    $region47: #{tpu_custom_call.1} parent=1 // pred_check_branch
      %393 = sbr.rel (0) target = $region49
    $region48: #{tpu_custom_call.1} parent=1 // pred_region
      %394 = dma.done [#allocation4], 256
    $region49: #{tpu_custom_call.1} parent=1 // pred_fallthru
      _
    %395 = vsyncpa [#allocation3], 1
    %396 = vsyncpa [#allocation6], 1
    %397 = vsyncpa [#allocation4], 1

</llo_original>
